<compile_context>
chip_gen: v7x
topology: tpu7x:2x2x1
jax: 0.10.0
libtpu: 0.0.40
codegen_flags: <defaults>
</compile_context>

<pallas_src>
import jax
import jax.numpy as jnp
from jax.experimental import pallas as pl
from jax.experimental.pallas import tpu as pltpu

LANE = 128          # TPU lane width
TB_MAX = 2048       # batch-tile cap: safe for v7x's 64 MiB/TC VMEM, still >=512 rows


def _round_up(n, m):
    return (n + m - 1) // m * m


def mlp_kernel(xt_ref, w1_ref, b1_ref, w2_ref, b2_ref, o_ref):
    # xt_ref: (10, TB)  -- batch on the lane axis (lane-dense)
    # w1_ref: (50, 10), b1_ref: (50, 1), w2_ref: (50, 1), b2_ref: (1, 1)
    # Hidden layer on the MXU, f32 accumulation: (50,10) @ (10,TB) -> (50,TB)
    h = jnp.dot(w1_ref[...], xt_ref[...], preferred_element_type=jnp.float32)
    h = jnp.maximum(h + b1_ref[...], 0.0)
    # Second layer has N=1: VPU multiply + cross-sublane reduce instead of an
    # MXU matmul whose 128-wide result would be 1/128 useful.
    y = jnp.sum(h * w2_ref[...], axis=0, keepdims=True) + b2_ref[...]   # (1, TB)
    o_ref[...] = y.astype(o_ref.dtype)


def simple_mlp_forward(x, w1, b1, w2, b2):
    """x: (B, 10); w1: (50, 10); b1: (50,); w2: (1, 50); b2: (1,).  Returns (B, 1)."""
    B, in_f = x.shape
    hid = w1.shape[0]

    # Lane-dense batch tile: at least one full vreg of lanes, capped for v7x VMEM.
    TB = min(TB_MAX, _round_up(max(B, 1), LANE))
    B_pad = _round_up(max(B, 1), TB)
    grid = (B_pad // TB,)

    # Transposed, padded dataflow: batch on the last (lane) axis everywhere.
    xt = jnp.pad(x.T, ((0, 0), (0, B_pad - B)))        # (10, B_pad)
    b1_col = b1.reshape(hid, 1)                        # (50, 1)
    w2_col = w2.T                                      # (50, 1)
    b2_2d = b2.reshape(1, 1)                           # (1, 1)

    y_pad = pl.pallas_call(
        mlp_kernel,
        out_shape=jax.ShapeDtypeStruct((1, B_pad), x.dtype),
        grid=grid,
        in_specs=[
            pl.BlockSpec((in_f, TB), lambda i: (0, i)),   # x tile, streamed per step
            pl.BlockSpec((hid, in_f), lambda i: (0, 0)),  # w1: resident across steps
            pl.BlockSpec((hid, 1), lambda i: (0, 0)),     # b1: resident
            pl.BlockSpec((hid, 1), lambda i: (0, 0)),     # w2: resident
            pl.BlockSpec((1, 1), lambda i: (0, 0)),       # b2: resident
        ],
        out_specs=pl.BlockSpec((1, TB), lambda i: (0, i)),
        compiler_params=pltpu.CompilerParams(
            dimension_semantics=("parallel",),
        ),
    )(xt, w1, b1_col, w2_col, b2_2d)

    return y_pad[:, :B].T                               # (B, 1)


def init_params(key):
    """Deterministic init mimicking torch.nn.Linear default (uniform +/- 1/sqrt(fan_in))."""
    k1, k2, k3, k4 = jax.random.split(key, 4)
    bound1 = 1.0 / jnp.sqrt(10.0)
    bound2 = 1.0 / jnp.sqrt(50.0)
    w1 = jax.random.uniform(k1, (50, 10), jnp.float32, -bound1, bound1)
    b1 = jax.random.uniform(k2, (50,), jnp.float32, -bound1, bound1)
    w2 = jax.random.uniform(k3, (1, 50), jnp.float32, -bound2, bound2)
    b2 = jax.random.uniform(k4, (1,), jnp.float32, -bound2, bound2)
    return w1, b1, w2, b2


def _reference(x, w1, b1, w2, b2):
    return jnp.maximum(x @ w1.T + b1, 0.0) @ w2.T + b2


if __name__ == "__main__":
    key = jax.random.PRNGKey(0)
    k_params, k_x1, k_x2 = jax.random.split(key, 3)
    w1, b1, w2, b2 = init_params(k_params)

    fwd = jax.jit(simple_mlp_forward)

    # Small case (single grid step, padded 8 -> 128 lanes).
    batch = 8
    x_small = jax.random.normal(k_x1, (batch, 10), jnp.float32)
    out_small = jax.block_until_ready(fwd(x_small, w1, b1, w2, b2))
    ref_small = _reference(x_small, w1, b1, w2, b2)
    assert out_small.shape == (batch, 1)
    assert jnp.allclose(out_small, ref_small, atol=1e-4, rtol=1e-4)

    # Larger ragged case that exercises the batch grid (TB=2048, 2 grid steps).
    batch2 = 2500
    x_big = jax.random.normal(k_x2, (batch2, 10), jnp.float32)
    out_big = jax.block_until_ready(fwd(x_big, w1, b1, w2, b2))
    ref_big = _reference(x_big, w1, b1, w2, b2)
    assert out_big.shape == (batch2, 1)
    assert jnp.allclose(out_big, ref_big, atol=1e-4, rtol=1e-4)

    print("KERNEL_OK")
</pallas_src>

<mosaic_0001>
module attributes {stable_mosaic.version = 11 : i64} {
  func.func @mlp_kernel(%arg0: i32, %arg1: memref<10x128xf32, #tpu.memory_space<vmem>>, %arg2: memref<50x10xf32, #tpu.memory_space<vmem>>, %arg3: memref<50x1xf32, #tpu.memory_space<vmem>>, %arg4: memref<50x1xf32, #tpu.memory_space<vmem>>, %arg5: memref<1x1xf32, #tpu.memory_space<vmem>>, %arg6: memref<1x128xf32, #tpu.memory_space<vmem>>) attributes {dimension_semantics = [#tpu.dimension_semantics<parallel>], iteration_bounds = array<i64: 1>, scalar_prefetch = 0 : i64, scratch_operands = 0 : i64, tpu.core_type = #tpu.core_type<tc>, window_params = [{transform_indices = @transform_0, window_bounds = array<i64: 10, 128>}, {pipeline_mode = #tpu.pipeline_mode<synchronous>, transform_indices = @transform_1, window_bounds = array<i64: 50, 10>}, {pipeline_mode = #tpu.pipeline_mode<synchronous>, transform_indices = @transform_2, window_bounds = array<i64: 50, 1>}, {pipeline_mode = #tpu.pipeline_mode<synchronous>, transform_indices = @transform_3, window_bounds = array<i64: 50, 1>}, {pipeline_mode = #tpu.pipeline_mode<synchronous>, transform_indices = @transform_4, window_bounds = array<i64: 1, 1>}, {transform_indices = @transform_5, window_bounds = array<i64: 1, 128>}]} {
    %c0 = arith.constant 0 : index
    %c0_0 = arith.constant 0 : index
    %0 = vector.load %arg2[%c0, %c0_0] : memref<50x10xf32, #tpu.memory_space<vmem>>, vector<50x10xf32>
    %c0_1 = arith.constant 0 : index
    %c0_2 = arith.constant 0 : index
    %1 = vector.load %arg1[%c0_1, %c0_2] : memref<10x128xf32, #tpu.memory_space<vmem>>, vector<10x128xf32>
    %cst = arith.constant dense<0.000000e+00> : vector<50x128xf32>
    %2 = tpu.matmul %0, %1, %cst {dimension_numbers = #tpu.dot_dimension_numbers<[1], [0], [0], [1], [0, 0, 1, 1], [], []>} : vector<50x10xf32>, vector<10x128xf32>, vector<50x128xf32> -> vector<50x128xf32>
    %c0_3 = arith.constant 0 : index
    %c0_4 = arith.constant 0 : index
    %3 = vector.load %arg3[%c0_3, %c0_4] : memref<50x1xf32, #tpu.memory_space<vmem>>, vector<50x1xf32>
    %4 = vector.broadcast %3 : vector<50x1xf32> to vector<50x128xf32>
    %5 = arith.addf %2, %4 : vector<50x128xf32>
    %cst_5 = arith.constant 0.000000e+00 : f32
    %6 = vector.broadcast %cst_5 : f32 to vector<50x128xf32>
    %7 = arith.maximumf %5, %6 : vector<50x128xf32>
    %c0_6 = arith.constant 0 : index
    %c0_7 = arith.constant 0 : index
    %8 = vector.load %arg4[%c0_6, %c0_7] : memref<50x1xf32, #tpu.memory_space<vmem>>, vector<50x1xf32>
    %9 = vector.broadcast %8 : vector<50x1xf32> to vector<50x128xf32>
    %10 = arith.mulf %7, %9 : vector<50x128xf32>
    %cst_8 = arith.constant dense<0.000000e+00> : vector<128xf32>
    %11 = vector.multi_reduction <add>, %10, %cst_8 [0] : vector<50x128xf32> to vector<128xf32>
    %12 = vector.shape_cast %11 : vector<128xf32> to vector<1x128xf32>
    %c0_9 = arith.constant 0 : index
    %c0_10 = arith.constant 0 : index
    %13 = vector.load %arg5[%c0_9, %c0_10] : memref<1x1xf32, #tpu.memory_space<vmem>>, vector<1x1xf32>
    %14 = vector.broadcast %13 : vector<1x1xf32> to vector<1x128xf32>
    %15 = arith.addf %12, %14 : vector<1x128xf32>
    %c0_11 = arith.constant 0 : index
    %c0_12 = arith.constant 0 : index
    %16 = vector.load %arg6[%c0_11, %c0_12] : memref<1x128xf32, #tpu.memory_space<vmem>>, vector<1x128xf32>
    tpu.vector_store %arg6[%c0_11, %c0_12], %15 {strides = array<i32>} : memref<1x128xf32, #tpu.memory_space<vmem>>, vector<1x128xf32>,
    return
  }
  func.func @transform_0(%arg0: i32) -> (i32, i32) {
    %c0_i32 = arith.constant 0 : i32
    %c0_i32_0 = arith.constant 0 : i32
    return %c0_i32, %arg0 : i32, i32
  }
  func.func @transform_1(%arg0: i32) -> (i32, i32) {
    %c0_i32 = arith.constant 0 : i32
    %c0_i32_0 = arith.constant 0 : i32
    %c0_i32_1 = arith.constant 0 : i32
    return %c0_i32, %c0_i32_0 : i32, i32
  }
  func.func @transform_2(%arg0: i32) -> (i32, i32) {
    %c0_i32 = arith.constant 0 : i32
    %c0_i32_0 = arith.constant 0 : i32
    %c0_i32_1 = arith.constant 0 : i32
    return %c0_i32, %c0_i32_0 : i32, i32
  }
  func.func @transform_3(%arg0: i32) -> (i32, i32) {
    %c0_i32 = arith.constant 0 : i32
    %c0_i32_0 = arith.constant 0 : i32
    %c0_i32_1 = arith.constant 0 : i32
    return %c0_i32, %c0_i32_0 : i32, i32
  }
  func.func @transform_4(%arg0: i32) -> (i32, i32) {
    %c0_i32 = arith.constant 0 : i32
    %c0_i32_0 = arith.constant 0 : i32
    %c0_i32_1 = arith.constant 0 : i32
    return %c0_i32, %c0_i32_0 : i32, i32
  }
  func.func @transform_5(%arg0: i32) -> (i32, i32) {
    %c0_i32 = arith.constant 0 : i32
    %c0_i32_0 = arith.constant 0 : i32
    return %c0_i32, %arg0 : i32, i32
  }
}

</mosaic_0001>

<llo_original>
// kernel: simple_mlp_forward.1
$region0: #{simple_mlp_forward.1}
  #allocation0 [shape = 'u32[]', space=smem, size = 0x4, offset = 0x4, fixed_abs, tag = 'smem constant byte address 0x4 - core index']
  #allocation1 [shape = 'u32[144,128]{1,0:T(1,128)}', space=vmem, size = 0x12000, scoped, tag = 'internal scratch']
  #allocation2 [shape = 'f32[1,1]{1,0:T(1,128)S(1)}', space=vmem, size = 0x200, scoped, tag = 'scoped memory for simple_mlp_forward.1']
  %s0 = inlined_call_operand.vmem [shape: f32[10,128], index: 0, kind: input, shape index: {}]
  %s1 = inlined_call_operand.vmem [shape: f32[50,10], index: 1, kind: input, shape index: {}]
  %s2 = inlined_call_operand.vmem [shape: f32[50,1], index: 2, kind: input, shape index: {}]
  %s3 = inlined_call_operand.vmem [shape: f32[50,1], index: 3, kind: input, shape index: {}]
  %s4 = inlined_call_operand.<no memory space> [shape: f32[1,1], index: 4, kind: input, shape index: {}]
  %s5 = inlined_call_operand.vmem [shape: f32[1,128], index: 5, kind: output, shape index: {}]
  %s6 = sld [smem:[#allocation0]]
  $region30: #{simple_mlp_forward.1} parent=0
    _
  %s8 = ssub.s32 1, %s6
  %s9 = scalar_select 0, %s8, %s6
  %v10 = vstv %s4
  %11 = vst [vmem:[#allocation2] sm:$0x1] %v10
  // Predicated region
  $region2: #{simple_mlp_forward.1} parent=0 // pred_check
    _
  $region3: #{simple_mlp_forward.1} parent=0 // pred_check_branch
    %13 = sbr.rel (0) target = $region5
  $region4: #{simple_mlp_forward.1} parent=0 // pred_region
    _
  $region5: #{simple_mlp_forward.1} parent=0 // pred_fallthru
    _
  // Predicated region
  $region6: #{simple_mlp_forward.1} parent=0 // pred_check
    _
  $region7: #{simple_mlp_forward.1} parent=0 // pred_check_branch
    %15 = sbr.rel (0) target = $region9
  $region8: #{simple_mlp_forward.1} parent=0 // pred_region
    _
  $region9: #{simple_mlp_forward.1} parent=0 // pred_fallthru
    _
  // Predicated region
  $region10: #{simple_mlp_forward.1} parent=0 // pred_check
    _
  $region11: #{simple_mlp_forward.1} parent=0 // pred_check_branch
    %17 = sbr.rel (0) target = $region13
  $region12: #{simple_mlp_forward.1} parent=0 // pred_region
    _
  $region13: #{simple_mlp_forward.1} parent=0 // pred_fallthru
    _
  // Predicated region
  $region14: #{simple_mlp_forward.1} parent=0 // pred_check
    _
  $region15: #{simple_mlp_forward.1} parent=0 // pred_check_branch
    %19 = sbr.rel (0) target = $region17
  $region16: #{simple_mlp_forward.1} parent=0 // pred_region
    _
  $region17: #{simple_mlp_forward.1} parent=0 // pred_fallthru
    _
  // Predicated region
  $region18: #{simple_mlp_forward.1} parent=0 // pred_check
    _
  $region19: #{simple_mlp_forward.1} parent=0 // pred_check_branch
    %21 = sbr.rel (0) target = $region21
  $region20: #{simple_mlp_forward.1} parent=0 // pred_region
    _
  $region21: #{simple_mlp_forward.1} parent=0 // pred_fallthru
    _
  %v22 = vld [vmem:[%s1] sm:$0xff]
  %v23 = vld [vmem:[%s1 + $0x8] sm:$0xff]
  %v24 = vld [vmem:[%s1 + $0x10] sm:$0xff]
  %v25 = vld [vmem:[%s1 + $0x18] sm:$0xff]
  %v26 = vld [vmem:[%s1 + $0x20] sm:$0xff]
  %v27 = vld [vmem:[%s1 + $0x28] sm:$0xff]
  %v28 = vld [vmem:[%s1 + $0x30] sm:$0x3]
  %v29 = vld [vmem:[%s0] sm:$0xff]
  %v30 = vld [vmem:[%s0 + $0x8] sm:$0x3]
  %v31 = vld [vmem:[%s2] sm:$0xff]
  %v32 = vld [vmem:[%s2 + $0x8] sm:$0xff]
  %v33 = vld [vmem:[%s2 + $0x10] sm:$0xff]
  %v34 = vld [vmem:[%s2 + $0x18] sm:$0xff]
  %v35 = vld [vmem:[%s2 + $0x20] sm:$0xff]
  %v36 = vld [vmem:[%s2 + $0x28] sm:$0xff]
  %v37 = vld [vmem:[%s2 + $0x30] sm:$0x3]
  %39 = vset.pattern.permute.xlu0 0
  %40 = vperm.xlu0 %39, %v31
  %v41 = vpop.permute.xlu0 %40
  %44 = vset.pattern.permute.xlu0 0
  %45 = vperm.xlu0 %44, %v32
  %v46 = vpop.permute.xlu0 %45
  %49 = vset.pattern.permute.xlu0 0
  %50 = vperm.xlu0 %49, %v33
  %v51 = vpop.permute.xlu0 %50
  %54 = vset.pattern.permute.xlu0 0
  %55 = vperm.xlu0 %54, %v34
  %v56 = vpop.permute.xlu0 %55
  %59 = vset.pattern.permute.xlu0 0
  %60 = vperm.xlu0 %59, %v35
  %v61 = vpop.permute.xlu0 %60
  %64 = vset.pattern.permute.xlu0 0
  %65 = vperm.xlu0 %64, %v36
  %v66 = vpop.permute.xlu0 %65
  %69 = vset.pattern.permute.xlu0 0
  %70 = vperm.xlu0 %69, %v37
  %v71 = vpop.permute.xlu0 %70
  %vm73 = vcmask 80896
  %v75 = vsel %vm73, %v22, 0
  %v78 = vsel %vm73, %v23, 0
  %v81 = vsel %vm73, %v24, 0
  %v84 = vsel %vm73, %v25, 0
  %v87 = vsel %vm73, %v26, 0
  %v90 = vsel %vm73, %v27, 0
  %v93 = vsel %vm73, %v28, 0
  %vm95 = vcmask 1041408
  %v97 = vsel %vm95, %v30, 0
  %99 = vmatprep.subr.mxu0 0.0
  %100 = vmatpush1.msra.mxu0 %v29
  %101 = vmatprep.subr.mxu0 0.0
  %102 = vmatpush1.msra.mxu0 %v97
  %103 = vmatprep.subr.mxu0 0.0
  %104 = vmatpush1.msra.mxu0 0.0
  %105 = vmatprep.subr.mxu0 0.0
  %106 = vmatpush1.msra.mxu0 0.0
  %107 = vmatprep.subr.mxu0 0.0
  %108 = vmatpush1.msra.mxu0 0.0
  %109 = vmatprep.subr.mxu0 0.0
  %110 = vmatpush1.msra.mxu0 0.0
  %111 = vmatprep.subr.mxu0 0.0
  %112 = vmatpush1.msra.mxu0 0.0
  %113 = vmatprep.subr.mxu0 0.0
  %114 = vmatpush1.msra.mxu0 0.0
  %115 = vmatprep.subr.mxu0 0.0
  %116 = vmatpush1.msra.mxu0 0.0
  %117 = vmatprep.subr.mxu0 0.0
  %118 = vmatpush1.msra.mxu0 0.0
  %119 = vmatprep.subr.mxu0 0.0
  %120 = vmatpush1.msra.mxu0 0.0
  %121 = vmatprep.subr.mxu0 0.0
  %122 = vmatpush1.msra.mxu0 0.0
  %123 = vmatprep.subr.mxu0 0.0
  %124 = vmatpush1.msra.mxu0 0.0
  %125 = vmatprep.subr.mxu0 0.0
  %126 = vmatpush1.msra.mxu0 0.0
  %127 = vmatprep.subr.mxu0 0.0
  %128 = vmatpush1.msra.mxu0 0.0
  %129 = vmatprep.subr.mxu0 0.0
  %130 = vmatpush1.msra.mxu0 0.0
  %131 = vmatprep.subr.mxu0 0.0
  %132 = vmatpush1.msra.mxu0 0.0
  %133 = vmatprep.subr.mxu0 0.0
  %134 = vmatpush1.msra.mxu0 0.0
  %135 = vmatprep.subr.mxu0 0.0
  %136 = vmatpush1.msra.mxu0 0.0
  %137 = vmatprep.subr.mxu0 0.0
  %138 = vmatpush1.msra.mxu0 0.0
  %139 = vmatprep.subr.mxu0 0.0
  %140 = vmatpush1.msra.mxu0 0.0
  %141 = vmatprep.subr.mxu0 0.0
  %142 = vmatpush1.msra.mxu0 0.0
  %143 = vmatprep.subr.mxu0 0.0
  %144 = vmatpush1.msra.mxu0 0.0
  %145 = vmatprep.subr.mxu0 0.0
  %146 = vmatpush1.msra.mxu0 0.0
  %147 = vmatprep.subr.mxu0 0.0
  %148 = vmatpush1.msra.mxu0 0.0
  %149 = vmatprep.subr.mxu0 0.0
  %150 = vmatpush1.msra.mxu0 0.0
  %151 = vmatprep.subr.mxu0 0.0
  %152 = vmatpush1.msra.mxu0 0.0
  %153 = vmatprep.subr.mxu0 0.0
  %154 = vmatpush1.msra.mxu0 0.0
  %155 = vmatprep.subr.mxu0 0.0
  %156 = vmatpush1.msra.mxu0 0.0
  %157 = vmatprep.subr.mxu0 0.0
  %158 = vmatpush1.msra.mxu0 0.0
  %159 = vmatprep.subr.mxu0 0.0
  %160 = vmatpush1.msra.mxu0 0.0
  %161 = vmatprep.subr.mxu0 0.0
  %162 = vmatpush1.msra.mxu0 0.0
  %163 = vmatprep.mubr.f32.mxu0 0.0
  %164 = vmatmul.mubr.f32.gmra.mrb[0].mxu0 %v75
  %v165 = vpop.f32.mrb[0].mxu0
  %v166 = vadd.f32 %v41, %v165
  %v167 = vpop.f32.mrb[0].mxu0
  %168 = vmatprep.mubr.f32.mxu0 0.0
  %169 = vmatmul.mubr.f32.gmra.mrb[0].mxu0 %v78
  %v170 = vpop.f32.mrb[0].mxu0
  %v171 = vadd.f32 %v46, %v170
  %v172 = vpop.f32.mrb[0].mxu0
  %173 = vmatprep.mubr.f32.mxu0 0.0
  %174 = vmatmul.mubr.f32.gmra.mrb[0].mxu0 %v81
  %v175 = vpop.f32.mrb[0].mxu0
  %v176 = vadd.f32 %v51, %v175
  %v177 = vpop.f32.mrb[0].mxu0
  %178 = vmatprep.mubr.f32.mxu0 0.0
  %179 = vmatmul.mubr.f32.gmra.mrb[0].mxu0 %v84
  %v180 = vpop.f32.mrb[0].mxu0
  %v181 = vadd.f32 %v56, %v180
  %v182 = vpop.f32.mrb[0].mxu0
  %183 = vmatprep.mubr.f32.mxu0 0.0
  %184 = vmatmul.mubr.f32.gmra.mrb[0].mxu0 %v87
  %v185 = vpop.f32.mrb[0].mxu0
  %v186 = vadd.f32 %v61, %v185
  %v187 = vpop.f32.mrb[0].mxu0
  %188 = vmatprep.mubr.f32.mxu0 0.0
  %189 = vmatmul.mubr.f32.gmra.mrb[0].mxu0 %v90
  %v190 = vpop.f32.mrb[0].mxu0
  %v191 = vadd.f32 %v66, %v190
  %v192 = vpop.f32.mrb[0].mxu0
  %193 = vmatprep.mubr.f32.mxu0 0.0
  %194 = vmatmul.mubr.f32.gmra.mrb[0].mxu0 %v93
  %v195 = vpop.f32.mrb[0].mxu0
  %v196 = vadd.f32 %v71, %v195
  %v197 = vpop.f32.mrb[0].mxu0
  %198 = vdwg.mxu0
  %v199 = vmax.f32 %v166, 0.0
  %v200 = vmax.f32 %v171, 0.0
  %v201 = vmax.f32 %v176, 0.0
  %v202 = vmax.f32 %v181, 0.0
  %v203 = vmax.f32 %v186, 0.0
  %v204 = vmax.f32 %v191, 0.0
  %v205 = vmax.f32 %v196, 0.0
  %v206 = vld [vmem:[%s3] sm:$0xff]
  %v207 = vld [vmem:[%s3 + $0x8] sm:$0xff]
  %v208 = vld [vmem:[%s3 + $0x10] sm:$0xff]
  %v209 = vld [vmem:[%s3 + $0x18] sm:$0xff]
  %v210 = vld [vmem:[%s3 + $0x20] sm:$0xff]
  %v211 = vld [vmem:[%s3 + $0x28] sm:$0xff]
  %v212 = vld [vmem:[%s3 + $0x30] sm:$0x3]
  %214 = vset.pattern.permute.xlu0 0
  %215 = vperm.xlu0 %214, %v206
  %v216 = vpop.permute.xlu0 %215
  %219 = vset.pattern.permute.xlu0 0
  %220 = vperm.xlu0 %219, %v207
  %v221 = vpop.permute.xlu0 %220
  %224 = vset.pattern.permute.xlu0 0
  %225 = vperm.xlu0 %224, %v208
  %v226 = vpop.permute.xlu0 %225
  %229 = vset.pattern.permute.xlu0 0
  %230 = vperm.xlu0 %229, %v209
  %v231 = vpop.permute.xlu0 %230
  %234 = vset.pattern.permute.xlu0 0
  %235 = vperm.xlu0 %234, %v210
  %v236 = vpop.permute.xlu0 %235
  %239 = vset.pattern.permute.xlu0 0
  %240 = vperm.xlu0 %239, %v211
  %v241 = vpop.permute.xlu0 %240
  %244 = vset.pattern.permute.xlu0 0
  %245 = vperm.xlu0 %244, %v212
  %v246 = vpop.permute.xlu0 %245
  %v248 = vmul.f32 %v199, %v216
  %v249 = vmul.f32 %v200, %v221
  %v250 = vmul.f32 %v201, %v226
  %v251 = vmul.f32 %v202, %v231
  %v252 = vmul.f32 %v203, %v236
  %v253 = vmul.f32 %v204, %v241
  %v254 = vmul.f32 %v205, %v246
  %v255 = vadd.f32 %v248, %v249
  %v256 = vadd.f32 %v255, %v250
  %v257 = vadd.f32 %v256, %v251
  %v258 = vadd.f32 %v257, %v252
  %v259 = vadd.f32 %v258, %v253
  %v260 = vsel %vm95, %v254, 0.0
  %v261 = vadd.f32 %v259, %v260
  %v262 = vrot.slane %v261, 4
  %v263 = vadd.f32 %v261, %v262
  %v264 = vrot.slane %v263, 2
  %v265 = vadd.f32 %v263, %v264
  %v266 = vrot.slane %v265, 1
  %v267 = vadd.f32 %v265, %v266
  %v268 = vld [vmem:[#allocation2] sm:$0x1]
  %270 = vset.pattern.permute.xlu0 0
  %271 = vperm.xlu0 %270, %v268
  %v272 = vpop.permute.xlu0 %271
  %v274 = vlaneseq
  %v275 = vshrl.u32 %v274, 7
  %v276 = vsub.s32 0, %v275
  %v277 = vrot.slane %v272, %v276
  %v278 = vadd.f32 %v267, %v277
  %279 = vst [vmem:[%s5] sm:$0x1] %v278
  // Predicated region
  $region22: #{simple_mlp_forward.1} parent=0 // pred_check
    _
  $region23: #{simple_mlp_forward.1} parent=0 // pred_check_branch
    %281 = sbr.rel (0) target = $region25
  $region24: #{simple_mlp_forward.1} parent=0 // pred_region
    _
  $region25: #{simple_mlp_forward.1} parent=0 // pred_fallthru
    _
  // Predicated region
  $region26: #{simple_mlp_forward.1} parent=0 // pred_check
    _
  $region27: #{simple_mlp_forward.1} parent=0 // pred_check_branch
    %283 = sbr.rel (0) target = $region29
  $region28: #{simple_mlp_forward.1} parent=0 // pred_region
    _
  $region29: #{simple_mlp_forward.1} parent=0 // pred_fallthru
    _

</llo_original>
